<compile_context>
chip_gen: v7x
topology: tpu7x:2x2x1
jax: 0.10.0
libtpu: 0.0.40
codegen_flags: <defaults>
</compile_context>

<pallas_src>
import math

import jax
import jax.numpy as jnp
from jax.experimental import pallas as pl
from jax.experimental.pallas import tpu as pltpu


def _fwi_inject_dma_kernel(x_ref, vp_ref, vs_ref, o_ref, sem):
    """vp -> channel 0, vs -> channel 1 of the aliased output, via HBM->HBM DMA.

    All refs live in HBM (memory_space=pl.ANY).  `x_ref` is the aliased
    destination and is never read: channels >= 2 pass through untouched thanks
    to input_output_aliases.  Both plane copies are started before either is
    waited on, so the DMA engines overlap them.
    """
    del x_ref  # aliased pass-through only: no read, no DMA, zero HBM traffic
    cp_vp = pltpu.make_async_copy(vp_ref, o_ref.at[0], sem.at[0])
    cp_vs = pltpu.make_async_copy(vs_ref, o_ref.at[1], sem.at[1])
    cp_vp.start()
    cp_vs.start()
    cp_vp.wait()
    cp_vs.wait()


def _lane_dense_view(n_elems):
    """Pick (rows, cols) with rows * cols == n_elems and cols a large multiple
    of 128 (lane-dense, independent of nz).  Returns None when no multiple of
    128 divides n_elems (caller then keeps the original contiguous shape)."""
    fallback = None
    for cols in (8192, 4096, 2048, 1024, 512, 256, 128):
        if n_elems % cols == 0:
            rows = n_elems // cols
            if rows >= 8:
                return rows, cols
            if fallback is None:
                fallback = (rows, cols)
    return fallback


def fwi_inject_channel_first(x_cf, vp, vs):
    """Inject vp/vs into channels 0/1 of a channel-first field (fast path).

    x_cf   : (C, nx, ny, nz), C >= 2   -- recommended end-to-end layout
    vp, vs : (nx, ny, nz)
    Returns an array with the same shape / dtype as x_cf.
    """
    C = x_cf.shape[0]
    plane_shape = tuple(x_cf.shape[1:])
    assert C >= 2, "auto_diff_FWI requires at least 2 channels (vp, vs)"
    assert vp.shape == plane_shape and vs.shape == plane_shape

    n = math.prod(plane_shape)
    view = _lane_dense_view(n)
    if view is None:
        # TODO(synk): plane size not a multiple of 128; each channel copy is
        # still a single contiguous DMA, descriptors are just less lane-dense.
        view = plane_shape

    # Contiguous flattens are free (no data movement), unlike the transposes
    # the previous version used.
    x2 = x_cf.reshape((C,) + tuple(view))
    vp2 = vp.reshape(view).astype(x_cf.dtype)
    vs2 = vs.reshape(view).astype(x_cf.dtype)

    out2 = pl.pallas_call(
        _fwi_inject_dma_kernel,
        out_shape=jax.ShapeDtypeStruct(x2.shape, x2.dtype),
        in_specs=[
            pl.BlockSpec(memory_space=pl.ANY),   # field (aliased, never read)
            pl.BlockSpec(memory_space=pl.ANY),   # vp plane (HBM, one DMA)
            pl.BlockSpec(memory_space=pl.ANY),   # vs plane (HBM, one DMA)
        ],
        out_specs=pl.BlockSpec(memory_space=pl.ANY),
        scratch_shapes=[pltpu.SemaphoreType.DMA((2,))],
        input_output_aliases={0: 0},
    )(x2, vp2, vs2)

    return out2.reshape(x_cf.shape)


def auto_diff_fwi_forward(x, vp, vs, model=None, *, channel_first=False):
    """Pallas equivalent of auto_diff_FWI.forward.

    channel_first=True  : x is (C, nx, ny, nz) -- recommended (zero relayouts).
    channel_first=False : x is (nx, ny, nz, C) -- exact PyTorch layout; the two
        transposes below each cost a full read+write of the field, so keep the
        field channel-first end-to-end (or fuse the injection into `model`'s
        first op) in production.
    """
    if channel_first:
        out = fwi_inject_channel_first(x, vp, vs)
    else:
        nx, ny, nz, C = x.shape
        assert vp.shape == (nx, ny, nz) and vs.shape == (nx, ny, nz)
        x_cf = jnp.transpose(x, (3, 0, 1, 2))
        out_cf = fwi_inject_channel_first(x_cf, vp, vs)
        out = jnp.transpose(out_cf, (1, 2, 3, 0))

    # TODO(synk): `model` is an arbitrary external nn.Module supplied at call
    # time in the PyTorch code; there is no generic Pallas translation.  If a
    # JAX callable is provided, apply it here; otherwise identity.
    if model is not None:
        out = model(out)
    return out


if __name__ == "__main__":
    key = jax.random.PRNGKey(0)
    k1, k2, k3, k4, k5, k6 = jax.random.split(key, 6)

    # ---- Primary path: channel-first field, zero relayouts, donated input so
    #      the aliased output reuses the field buffer end-to-end. ----
    nx, ny, nz, C = 4, 8, 128, 3
    x_cf = jax.random.normal(k1, (C, nx, ny, nz), dtype=jnp.float32)
    vp = jax.random.normal(k2, (nx, ny, nz), dtype=jnp.float32)
    vs = jax.random.normal(k3, (nx, ny, nz), dtype=jnp.float32)

    ref_cf = x_cf.at[0].set(vp).at[1].set(vs)  # reference before donation

    fwd_cf = jax.jit(
        lambda a, b, c: auto_diff_fwi_forward(a, b, c, channel_first=True),
        donate_argnums=(0,),
    )
    out_cf = jax.block_until_ready(fwd_cf(x_cf, vp, vs))
    assert out_cf.shape == (C, nx, ny, nz) and out_cf.dtype == jnp.float32
    assert jnp.array_equal(out_cf, ref_cf)

    # ---- Compatibility path: exact PyTorch channel-last layout.  nz is NOT a
    #      multiple of 128 (lane axis comes from the flattened plane) and
    #      C > 2 (channels >= 2 must pass through via the aliased output). ----
    nx2, ny2, nz2, C2 = 2, 8, 200, 4
    x_cl = jax.random.normal(k4, (nx2, ny2, nz2, C2), dtype=jnp.float32)
    vp2 = jax.random.normal(k5, (nx2, ny2, nz2), dtype=jnp.float32)
    vs2 = jax.random.normal(k6, (nx2, ny2, nz2), dtype=jnp.float32)

    fwd_cl = jax.jit(lambda a, b, c: auto_diff_fwi_forward(a, b, c))
    out_cl = jax.block_until_ready(fwd_cl(x_cl, vp2, vs2))
    ref_cl = x_cl.at[..., 0].set(vp2).at[..., 1].set(vs2)
    assert out_cl.shape == x_cl.shape and out_cl.dtype == x_cl.dtype
    assert jnp.array_equal(out_cl, ref_cl)

    print("KERNEL_OK")
</pallas_src>

<mosaic_0001>
module attributes {stable_mosaic.version = 11 : i64} {
  func.func @_fwi_inject_dma_kernel(%arg0: memref<3x8x512xf32, #tpu.memory_space<any>>, %arg1: memref<8x512xf32, #tpu.memory_space<any>>, %arg2: memref<8x512xf32, #tpu.memory_space<any>>, %arg3: memref<3x8x512xf32, #tpu.memory_space<any>>, %arg4: memref<2x!tpu.dma_semaphore, #tpu.memory_space<semaphore_mem>>) attributes {dimension_semantics = [], scalar_prefetch = 0 : i64, scratch_operands = 1 : i64, tpu.core_type = #tpu.core_type<tc>} {
    %c0_i32 = arith.constant 0 : i32
    %c0_i32_0 = arith.constant 0 : i32
    %c0_i32_1 = arith.constant 0 : i32
    %c0_i32_2 = arith.constant 0 : i32
    %0 = tpu.memref_slice %arg3[%c0_i32, %c0_i32_1, %c0_i32_2] : memref<3x8x512xf32, #tpu.memory_space<any>> -> memref<1x8x512xf32, #tpu.memory_space<any>>
    %1 = tpu.memref_squeeze %0 : memref<1x8x512xf32, #tpu.memory_space<any>> -> memref<8x512xf32, #tpu.memory_space<any>>
    %2 = tpu.memref_slice %arg4[%c0_i32_0] : memref<2x!tpu.dma_semaphore, #tpu.memory_space<semaphore_mem>> -> memref<1x!tpu.dma_semaphore, #tpu.memory_space<semaphore_mem>>
    %3 = tpu.memref_squeeze %2 : memref<1x!tpu.dma_semaphore, #tpu.memory_space<semaphore_mem>> -> memref<!tpu.dma_semaphore, #tpu.memory_space<semaphore_mem>>
    tpu.enqueue_dma source(%arg1 : memref<8x512xf32, #tpu.memory_space<any>>) target(%1 : memref<8x512xf32, #tpu.memory_space<any>>) target_semaphore(%3 : memref<!tpu.dma_semaphore, #tpu.memory_space<semaphore_mem>>)
    %c1_i32 = arith.constant 1 : i32
    %c1_i32_3 = arith.constant 1 : i32
    %c0_i32_4 = arith.constant 0 : i32
    %c0_i32_5 = arith.constant 0 : i32
    %4 = tpu.memref_slice %arg3[%c1_i32, %c0_i32_4, %c0_i32_5] : memref<3x8x512xf32, #tpu.memory_space<any>> -> memref<1x8x512xf32, #tpu.memory_space<any>>
    %5 = tpu.memref_squeeze %4 : memref<1x8x512xf32, #tpu.memory_space<any>> -> memref<8x512xf32, #tpu.memory_space<any>>
    %6 = tpu.memref_slice %arg4[%c1_i32_3] : memref<2x!tpu.dma_semaphore, #tpu.memory_space<semaphore_mem>> -> memref<1x!tpu.dma_semaphore, #tpu.memory_space<semaphore_mem>>
    %7 = tpu.memref_squeeze %6 : memref<1x!tpu.dma_semaphore, #tpu.memory_space<semaphore_mem>> -> memref<!tpu.dma_semaphore, #tpu.memory_space<semaphore_mem>>
    tpu.enqueue_dma source(%arg2 : memref<8x512xf32, #tpu.memory_space<any>>) target(%5 : memref<8x512xf32, #tpu.memory_space<any>>) target_semaphore(%7 : memref<!tpu.dma_semaphore, #tpu.memory_space<semaphore_mem>>)
    %c0_i32_6 = arith.constant 0 : i32
    %c0_i32_7 = arith.constant 0 : i32
    %c0_i32_8 = arith.constant 0 : i32
    %c0_i32_9 = arith.constant 0 : i32
    %8 = tpu.memref_slice %arg3[%c0_i32_6, %c0_i32_8, %c0_i32_9] : memref<3x8x512xf32, #tpu.memory_space<any>> -> memref<1x8x512xf32, #tpu.memory_space<any>>
    %9 = tpu.memref_squeeze %8 : memref<1x8x512xf32, #tpu.memory_space<any>> -> memref<8x512xf32, #tpu.memory_space<any>>
    %10 = tpu.memref_slice %arg4[%c0_i32_7] : memref<2x!tpu.dma_semaphore, #tpu.memory_space<semaphore_mem>> -> memref<1x!tpu.dma_semaphore, #tpu.memory_space<semaphore_mem>>
    %11 = tpu.memref_squeeze %10 : memref<1x!tpu.dma_semaphore, #tpu.memory_space<semaphore_mem>> -> memref<!tpu.dma_semaphore, #tpu.memory_space<semaphore_mem>>
    tpu.wait_dma2 semaphore(%11 : memref<!tpu.dma_semaphore, #tpu.memory_space<semaphore_mem>>) src(%arg1 : memref<8x512xf32, #tpu.memory_space<any>>) dst(%9 : memref<8x512xf32, #tpu.memory_space<any>>)
    %c1_i32_10 = arith.constant 1 : i32
    %c1_i32_11 = arith.constant 1 : i32
    %c0_i32_12 = arith.constant 0 : i32
    %c0_i32_13 = arith.constant 0 : i32
    %12 = tpu.memref_slice %arg3[%c1_i32_10, %c0_i32_12, %c0_i32_13] : memref<3x8x512xf32, #tpu.memory_space<any>> -> memref<1x8x512xf32, #tpu.memory_space<any>>
    %13 = tpu.memref_squeeze %12 : memref<1x8x512xf32, #tpu.memory_space<any>> -> memref<8x512xf32, #tpu.memory_space<any>>
    %14 = tpu.memref_slice %arg4[%c1_i32_11] : memref<2x!tpu.dma_semaphore, #tpu.memory_space<semaphore_mem>> -> memref<1x!tpu.dma_semaphore, #tpu.memory_space<semaphore_mem>>
    %15 = tpu.memref_squeeze %14 : memref<1x!tpu.dma_semaphore, #tpu.memory_space<semaphore_mem>> -> memref<!tpu.dma_semaphore, #tpu.memory_space<semaphore_mem>>
    tpu.wait_dma2 semaphore(%15 : memref<!tpu.dma_semaphore, #tpu.memory_space<semaphore_mem>>) src(%arg2 : memref<8x512xf32, #tpu.memory_space<any>>) dst(%13 : memref<8x512xf32, #tpu.memory_space<any>>)
    return
  }
}

</mosaic_0001>

<llo_original>
// kernel: _lambda_.1
$region0: #{_lambda_.1}
  #allocation0 [shape = 'u32[]', space=smem, size = 0x4, offset = 0x4, fixed_abs, tag = 'smem constant byte address 0x4 - core index']
  #allocation1 [shape = 'u32[144,128]{1,0:T(1,128)}', space=vmem, size = 0x12000, scoped, tag = 'internal scratch']
  #allocation2 [shape = 's32[2]{0}', space=sflag, size = 0x8, scoped, tag = 'scratch operand']
  #allocation3 [shape = 's32[]', space=sflag, size = 0x4, offset = 0, fixed_abs, tag = 'sflag constant byte address 0x0 - dummy sync flag']
  #allocation4 [shape = 's32[]', space=sflag, size = 0x4, offset = 0, fixed_abs, tag = 'sflag constant byte address 0x0 - dummy sync flag']
  %s0 = inlined_call_operand.vmem [shape: f32[3,8,512], index: 0, kind: input, shape index: {}, may-alias: {0,3}]
  %s1 = inlined_call_operand.vmem [shape: f32[8,512], index: 1, kind: input, shape index: {}]
  %s2 = inlined_call_operand.vmem [shape: f32[8,512], index: 2, kind: input, shape index: {}]
  %s3 = inlined_call_operand.vmem [shape: f32[3,8,512], index: 3, kind: output, shape index: {}, may-alias: {0,3}]
  %s4 = sld [smem:[#allocation0]]
  $region70: #{_lambda_.1} parent=0
    _
  %s6 = ssub.s32 1, %s4
  %s7 = scalar_select 0, %s6, %s4
  %p9 = scmp.lt.u32.totalorder 32, 8
  %p10 = pneg %p9
  // Predicated region
  $region2: #{_lambda_.1} parent=0 // pred_check
    _
  $region3: #{_lambda_.1} parent=0 // pred_check_branch
    %12 = sbr.rel (%p9) target = $region5
  $region4: #{_lambda_.1} parent=0 // pred_region
    %s27 = sand.u32 32, 7
    %p28 = scmp.eq.s32.totalorder %s27, 0
    // Predicated region
    $region17: #{_lambda_.1} parent=4 // pred_check
      %p29 = pneg %p28
    $region18: #{_lambda_.1} parent=4 // pred_check_branch
      %31 = sbr.rel (%p29) target = $region20
    $region19: #{_lambda_.1} parent=4 // pred_region
      loop: start=0, step=1, limit=1
      $region21: #{_lambda_.1} parent=19 // loop_pre_header
        _
      $region22: #{_lambda_.1} parent=19 // loop_header
        %s33 = sphi 0, %s37
        %p34 = scmp.ge.s32.totalorder %s33, 1
        %s38 = sphi %s1, %s1
        %s39 = sphi %s3, %s3
      $region23: #{_lambda_.1} parent=19 // loop_header_branch
        %36 = sbr.rel (%p34) target = $region27
      $region24: #{_lambda_.1} parent=19 // loop_body
        %v40 = vld [vmem:[%s38] sm:$0xff]
        %41 = vst [vmem:[%s39] sm:$0xff] %v40
        %v42 = vld [vmem:[%s38 + $0x8] sm:$0xff]
        %43 = vst [vmem:[%s39 + $0x8] sm:$0xff] %v42
        %v44 = vld [vmem:[%s38 + $0x10] sm:$0xff]
        %45 = vst [vmem:[%s39 + $0x10] sm:$0xff] %v44
        %v46 = vld [vmem:[%s38 + $0x18] sm:$0xff]
        %47 = vst [vmem:[%s39 + $0x18] sm:$0xff] %v46
      $region25: #{_lambda_.1} parent=19 // loop_footer
        %s37 = sadd.s32 1, %s33
      $region26: #{_lambda_.1} parent=19 // loop_footer_branch
        %32 = sbr.rel target = $region22
      $region27: #{_lambda_.1} parent=19 // loop_exit
        _
    $region20: #{_lambda_.1} parent=4 // pred_fallthru
      _
    %p48 = pneg %p28
    // Predicated region
    $region28: #{_lambda_.1} parent=4 // pred_check
      _
    $region29: #{_lambda_.1} parent=4 // pred_check_branch
      %50 = sbr.rel (%p28) target = $region31
    $region30: #{_lambda_.1} parent=4 // pred_region
      %s51 = sand.u32 32, 7
    $region31: #{_lambda_.1} parent=4 // pred_fallthru
      _
  $region5: #{_lambda_.1} parent=0 // pred_fallthru
    _
  // Predicated region
  $region6: #{_lambda_.1} parent=0 // pred_check
    %p13 = pneg %p9
  $region7: #{_lambda_.1} parent=0 // pred_check_branch
    %15 = sbr.rel (%p13) target = $region9
  $region8: #{_lambda_.1} parent=0 // pred_region
    %s16 = sshllo.u32 0, 32
    loop: start=0, step=1, limit=1
    $region10: #{_lambda_.1} parent=8 // loop_pre_header
      _
    $region11: #{_lambda_.1} parent=8 // loop_header
      %s18 = sphi 0, %s22
      %p19 = scmp.ge.s32.totalorder %s18, 1
      %s23 = sphi %s1, %s1
      %s24 = sphi %s3, %s3
    $region12: #{_lambda_.1} parent=8 // loop_header_branch
      %21 = sbr.rel (%p19) target = $region16
    $region13: #{_lambda_.1} parent=8 // loop_body
      %v25 = vld [vmem:[%s23] sm:%s16]
      %26 = vst [vmem:[%s24] sm:%s16] %v25
    $region14: #{_lambda_.1} parent=8 // loop_footer
      %s22 = sadd.s32 1, %s18
    $region15: #{_lambda_.1} parent=8 // loop_footer_branch
      %17 = sbr.rel target = $region11
    $region16: #{_lambda_.1} parent=8 // loop_exit
      _
  $region9: #{_lambda_.1} parent=0 // pred_fallthru
    _
  // Predicated region
  $region32: #{_lambda_.1} parent=0 // pred_check
    _
  $region33: #{_lambda_.1} parent=0 // pred_check_branch
    %54 = sbr.rel (0) target = $region35
  $region34: #{_lambda_.1} parent=0 // pred_region
    %55 = vsyncadd [#allocation2], 512
  $region35: #{_lambda_.1} parent=0 // pred_fallthru
    _
  %s56 = scalar_lea.vmem %s3, 32
  %s57 = scalar_lea.sflag [#allocation2], 1
  %p59 = scmp.lt.u32.totalorder 32, 8
  %p60 = pneg %p59
  // Predicated region
  $region36: #{_lambda_.1} parent=0 // pred_check
    _
  $region37: #{_lambda_.1} parent=0 // pred_check_branch
    %62 = sbr.rel (%p59) target = $region39
  $region38: #{_lambda_.1} parent=0 // pred_region
    %s77 = sand.u32 32, 7
    %p78 = scmp.eq.s32.totalorder %s77, 0
    // Predicated region
    $region51: #{_lambda_.1} parent=38 // pred_check
      %p79 = pneg %p78
    $region52: #{_lambda_.1} parent=38 // pred_check_branch
      %81 = sbr.rel (%p79) target = $region54
    $region53: #{_lambda_.1} parent=38 // pred_region
      loop: start=0, step=1, limit=1
      $region55: #{_lambda_.1} parent=53 // loop_pre_header
        _
      $region56: #{_lambda_.1} parent=53 // loop_header
        %s83 = sphi 0, %s87
        %p84 = scmp.ge.s32.totalorder %s83, 1
        %s88 = sphi %s2, %s2
        %s89 = sphi %s56, %s56
      $region57: #{_lambda_.1} parent=53 // loop_header_branch
        %86 = sbr.rel (%p84) target = $region61
      $region58: #{_lambda_.1} parent=53 // loop_body
        %v90 = vld [vmem:[%s88] sm:$0xff]
        %91 = vst [vmem:[%s89] sm:$0xff] %v90
        %v92 = vld [vmem:[%s88 + $0x8] sm:$0xff]
        %93 = vst [vmem:[%s89 + $0x8] sm:$0xff] %v92
        %v94 = vld [vmem:[%s88 + $0x10] sm:$0xff]
        %95 = vst [vmem:[%s89 + $0x10] sm:$0xff] %v94
        %v96 = vld [vmem:[%s88 + $0x18] sm:$0xff]
        %97 = vst [vmem:[%s89 + $0x18] sm:$0xff] %v96
      $region59: #{_lambda_.1} parent=53 // loop_footer
        %s87 = sadd.s32 1, %s83
      $region60: #{_lambda_.1} parent=53 // loop_footer_branch
        %82 = sbr.rel target = $region56
      $region61: #{_lambda_.1} parent=53 // loop_exit
        _
    $region54: #{_lambda_.1} parent=38 // pred_fallthru
      _
    %p98 = pneg %p78
    // Predicated region
    $region62: #{_lambda_.1} parent=38 // pred_check
      _
    $region63: #{_lambda_.1} parent=38 // pred_check_branch
      %100 = sbr.rel (%p78) target = $region65
    $region64: #{_lambda_.1} parent=38 // pred_region
      %s101 = sand.u32 32, 7
    $region65: #{_lambda_.1} parent=38 // pred_fallthru
      _
  $region39: #{_lambda_.1} parent=0 // pred_fallthru
    _
  // Predicated region
  $region40: #{_lambda_.1} parent=0 // pred_check
    %p63 = pneg %p59
  $region41: #{_lambda_.1} parent=0 // pred_check_branch
    %65 = sbr.rel (%p63) target = $region43
  $region42: #{_lambda_.1} parent=0 // pred_region
    %s66 = sshllo.u32 0, 32
    loop: start=0, step=1, limit=1
    $region44: #{_lambda_.1} parent=42 // loop_pre_header
      _
    $region45: #{_lambda_.1} parent=42 // loop_header
      %s68 = sphi 0, %s72
      %p69 = scmp.ge.s32.totalorder %s68, 1
      %s73 = sphi %s2, %s2
      %s74 = sphi %s56, %s56
    $region46: #{_lambda_.1} parent=42 // loop_header_branch
      %71 = sbr.rel (%p69) target = $region50
    $region47: #{_lambda_.1} parent=42 // loop_body
      %v75 = vld [vmem:[%s73] sm:%s66]
      %76 = vst [vmem:[%s74] sm:%s66] %v75
    $region48: #{_lambda_.1} parent=42 // loop_footer
      %s72 = sadd.s32 1, %s68
    $region49: #{_lambda_.1} parent=42 // loop_footer_branch
      %67 = sbr.rel target = $region45
    $region50: #{_lambda_.1} parent=42 // loop_exit
      _
  $region43: #{_lambda_.1} parent=0 // pred_fallthru
    _
  // Predicated region
  $region66: #{_lambda_.1} parent=0 // pred_check
    _
  $region67: #{_lambda_.1} parent=0 // pred_check_branch
    %104 = sbr.rel (0) target = $region69
  $region68: #{_lambda_.1} parent=0 // pred_region
    %105 = vsyncadd %s57, 512
  $region69: #{_lambda_.1} parent=0 // pred_fallthru
    _
  %s106 = smul.u32 8, 1
  %s107 = smul.u32 %s106, 4
  %s108 = sshll.u32 %s107, 4
  %109 = dma.done [#allocation2], %s108
  %s110 = sshll.u32 %s107, 4
  %111 = dma.done %s57, %s110
  %112 = vsyncmov [#allocation2]
  %s113 = vpop.sfrf %112
  %p114 = scmp.eq.s32.totalorder %s113, 0
  %p115 = pneg %p114
  %117 = shalt.err (%p115)
  %s118 = scalar_lea.sflag [#allocation2], 1
  %119 = vsyncmov %s118
  %s120 = vpop.sfrf %119
  %p121 = scmp.eq.s32.totalorder %s120, 0
  %p122 = pneg %p121
  %124 = shalt.err (%p122)

</llo_original>
